<compile_context>
chip_gen: v7x
topology: tpu7x:2x2x1
jax: 0.10.0
libtpu: 0.0.40
codegen_flags: <defaults>
</compile_context>

<pallas_src>
import functools

import jax
import jax.numpy as jnp
from jax.experimental import pallas as pl
from jax.experimental.pallas import tpu as pltpu

LANE = 128      # internal hidden dims are padded to the 128-lane vreg width
SUBLANE = 8     # batch tile must be a multiple of the sublane count


def _pad_up(n, m):
    return ((n + m - 1) // m) * m


def _act(x, activation):
    if activation == "Tanh":
        return jnp.tanh(x)
    elif activation == "ReLU":
        return jnp.maximum(x, 0.0)
    raise ValueError(f"unsupported activation: {activation}")


def _default_bf16_activations():
    """bf16 tanh/relu on v6e+ (bf16 VPU/EUP); f32 on v5e and older / unknown."""
    try:
        kind = jax.devices()[0].device_kind.lower()
    except Exception:
        return False
    return not any(old in kind for old in ("v2", "v3", "v4", "v5"))


def autoencoder_kernel(
    x_ref,
    w1_ref, b1_ref, w2_ref, b2_ref, w3_ref, b3_ref,
    w4_ref, b4_ref, w5_ref, b5_ref, w6_ref, b6_ref,
    out_ref,
    *,
    activation: str,
    bf16_activations: bool,
):
    # (weight, bias, apply_activation) — activation after layers 1,2,4,5 only.
    layers = (
        (w1_ref, b1_ref, True),
        (w2_ref, b2_ref, True),
        (w3_ref, b3_ref, False),   # -> latent
        (w4_ref, b4_ref, True),
        (w5_ref, b5_ref, True),
        (w6_ref, b6_ref, False),   # -> reconstruction
    )
    h = x_ref[...]                                   # bf16 (tb, input_size)
    for w_ref, b_ref, has_act in layers:
        # bf16 operands into the MXU, f32 accumulation; bias add stays f32.
        y = jnp.dot(h.astype(jnp.bfloat16), w_ref[...],
                    preferred_element_type=jnp.float32) + b_ref[...]
        if has_act:
            # v6e/v7x: activation in bf16 (EUP bf16 rate, no per-layer f32
            # cast passes).  v5e: keep the activation in f32.
            h = _act(y.astype(jnp.bfloat16), activation) if bf16_activations \
                else _act(y, activation)
        else:
            h = y                                    # latent / final stay f32
    out_ref[...] = h.astype(out_ref.dtype)


def prepare_padded_params(params):
    """Zero-pad internal dims to lane multiples; keep the HBM-facing dims
    (first layer's in-dim, last layer's out-dim) unpadded.

    Weights -> bf16 (MXU operands); biases stay f32 as (1, out_pad).
    Padding is exact: padded rows/cols/bias entries are 0 and tanh(0)=relu(0)=0,
    so padded lanes stay 0 through all six layers.
    """
    n = len(params)
    padded = []
    for idx, (w, b) in enumerate(params):
        d_in, d_out = w.shape
        pi = d_in if idx == 0 else _pad_up(d_in, LANE)
        po = d_out if idx == n - 1 else _pad_up(d_out, LANE)
        w_p = jnp.zeros((pi, po), jnp.bfloat16).at[:d_in, :d_out].set(
            w.astype(jnp.bfloat16))
        b_p = jnp.zeros((1, po), jnp.float32).at[0, :d_out].set(
            b.astype(jnp.float32))
        padded.append((w_p, b_p))
    return padded


def simple_autoencoder_forward(x, params, activation="Tanh", batch_tile=2048,
                               bf16_activations=None):
    """x: (batch, input_size). params: list of 6 (W:(in,out), b:(out,))."""
    batch, input_size = x.shape
    if bf16_activations is None:
        bf16_activations = _default_bf16_activations()

    padded_params = prepare_padded_params(params)

    # --- batch tiling -------------------------------------------------------
    # Round the batch to the sublane count first, then pick the tile so that
    #  * there are >= 2 grid steps whenever the batch allows (v7x megacore),
    #  * padded rows per call stay below one sublane group per grid step
    #    (e.g. batch=520 -> tb=264, batch_pad=528, NOT 1024).
    batch_sub = _pad_up(batch, SUBLANE)
    grid_target = pl.cdiv(batch_sub, batch_tile)
    if batch_sub >= 2 * SUBLANE:
        grid_target = max(grid_target, 2)
    tb = _pad_up(pl.cdiv(batch_sub, grid_target), SUBLANE)
    grid = pl.cdiv(batch_sub, tb)
    batch_pad = grid * tb

    # --- streamed input: bf16, no feature-dim padding -----------------------
    x_bf = x.astype(jnp.bfloat16)
    if batch_pad != batch:
        x_p = jnp.zeros((batch_pad, input_size), jnp.bfloat16).at[:batch].set(x_bf)
    else:
        x_p = x_bf

    flat_params = []
    in_specs = [pl.BlockSpec((tb, input_size), lambda i: (i, 0))]   # streamed x
    for w_p, b_p in padded_params:
        flat_params.extend([w_p, b_p])
        # Constant index_map -> weights/biases resident across the whole grid.
        in_specs.append(pl.BlockSpec(w_p.shape, lambda i: (0, 0)))
        in_specs.append(pl.BlockSpec(b_p.shape, lambda i: (0, 0)))
    out_spec = pl.BlockSpec((tb, input_size), lambda i: (i, 0))

    # Advisory cost estimate so XLA schedules the surrounding cast/pad sanely.
    flops = sum(2 * batch_pad * w_p.shape[0] * w_p.shape[1]
                for w_p, _ in padded_params)
    transcendentals = 0
    if activation == "Tanh":
        transcendentals = batch_pad * sum(
            padded_params[i][0].shape[1] for i in (0, 1, 3, 4))
    bytes_accessed = (
        x_p.size * 2                                  # bf16 input slab
        + batch_pad * input_size * 4                  # f32 output slab
        + sum(w_p.size * 2 + b_p.size * 4 for w_p, b_p in padded_params))

    kernel = functools.partial(autoencoder_kernel, activation=activation,
                               bf16_activations=bf16_activations)

    # VMEM budget (tb=2048): 2 bufs x (bf16 x-tile 256 KiB + f32 out-tile
    # 512 KiB) + ~0.4 MiB weights + a few MiB of layer temporaries -> well
    # under every generation's scoped default (v5e 16 MiB), no override needed.
    out_p = pl.pallas_call(
        kernel,
        out_shape=jax.ShapeDtypeStruct((batch_pad, input_size), x.dtype),
        grid=(grid,),
        in_specs=in_specs,
        out_specs=out_spec,
        compiler_params=pltpu.CompilerParams(
            dimension_semantics=("parallel",),
        ),
        cost_estimate=pl.CostEstimate(
            flops=flops,
            transcendentals=transcendentals,
            bytes_accessed=bytes_accessed),
    )(x_p, *flat_params)

    if batch_pad != batch:
        out_p = out_p[:batch]
    return out_p


def init_params(key, input_size, latent_dim, layer_size_1, layer_size_2,
                dtype=jnp.float32):
    """Deterministic init; layer i: W shape (in, out), b shape (out,)."""
    dims = [
        (input_size, layer_size_1),
        (layer_size_1, layer_size_2),
        (layer_size_2, latent_dim),
        (latent_dim, layer_size_2),
        (layer_size_2, layer_size_1),
        (layer_size_1, input_size),
    ]
    params = []
    for (d_in, d_out) in dims:
        key, kw, kb = jax.random.split(key, 3)
        scale = 1.0 / jnp.sqrt(d_in)
        w = jax.random.uniform(kw, (d_in, d_out), dtype, -scale, scale)
        b = jax.random.uniform(kb, (d_out,), dtype, -scale, scale)
        params.append((w, b))
    return params


def reference_forward(x, params, activation="Tanh", compute_dtype=None,
                      bf16_activations=False):
    """Pure-JAX reference. compute_dtype=bf16 (+bf16_activations) mimics the
    kernel's MXU / activation casts exactly; compute_dtype=None is full f32."""
    act = jnp.tanh if activation == "Tanh" else (lambda v: jnp.maximum(v, 0.0))
    h = x.astype(compute_dtype) if compute_dtype is not None else x.astype(jnp.float32)
    for i, (w, b) in enumerate(params):
        hh = h.astype(compute_dtype) if compute_dtype is not None else h
        ww = w.astype(compute_dtype) if compute_dtype is not None else w
        y = jnp.dot(hh, ww, preferred_element_type=jnp.float32) + b.astype(jnp.float32)
        if i in (0, 1, 3, 4):   # no activation after latent / final layer
            if compute_dtype is not None and bf16_activations:
                h = act(y.astype(compute_dtype))
            else:
                h = act(y)
        else:
            h = y
    return h.astype(x.dtype)


if __name__ == "__main__":
    # Small shapes consistent with the module's constructor arguments.
    batch = 8
    input_size = 64
    layer_size_1 = 128
    layer_size_2 = 64
    latent_dim = 32

    key = jax.random.PRNGKey(0)
    kx, kp = jax.random.split(key)
    x = jax.random.normal(kx, (batch, input_size), dtype=jnp.float32)
    params = init_params(kp, input_size, latent_dim, layer_size_1, layer_size_2)

    act_bf16 = _default_bf16_activations()

    for activation in ("Tanh", "ReLU"):
        out = simple_autoencoder_forward(
            x, params, activation=activation, bf16_activations=act_bf16)
        out = jax.block_until_ready(out)
        assert out.shape == (batch, input_size)

        # Tight check vs. a reference that mimics the kernel's bf16 casts.
        ref_bf16 = reference_forward(x, params, activation,
                                     compute_dtype=jnp.bfloat16,
                                     bf16_activations=act_bf16)
        assert jnp.allclose(out, ref_bf16, atol=2e-3, rtol=2e-3), \
            f"{activation}: mismatch vs bf16 reference"

        # Loose check vs. the full-f32 reference (bf16 rounding allowed).
        ref_f32 = reference_forward(x, params, activation)
        assert jnp.allclose(out, ref_f32, atol=5e-2, rtol=5e-2), \
            f"{activation}: mismatch vs f32 reference"

    # TODO(synk): compute_loss (nn.MSELoss) is a training-time scalar reduction,
    # not part of forward(); left to plain JAX (jnp.mean((x - out) ** 2)).
    print("KERNEL_OK")
</pallas_src>

<mosaic_0001>
module attributes {stable_mosaic.version = 11 : i64} {
  func.func @autoencoder_kernel(%arg0: i32, %arg1: memref<8x64xbf16, #tpu.memory_space<vmem>>, %arg2: memref<64x128xbf16, #tpu.memory_space<vmem>>, %arg3: memref<1x128xf32, #tpu.memory_space<vmem>>, %arg4: memref<128x128xbf16, #tpu.memory_space<vmem>>, %arg5: memref<1x128xf32, #tpu.memory_space<vmem>>, %arg6: memref<128x128xbf16, #tpu.memory_space<vmem>>, %arg7: memref<1x128xf32, #tpu.memory_space<vmem>>, %arg8: memref<128x128xbf16, #tpu.memory_space<vmem>>, %arg9: memref<1x128xf32, #tpu.memory_space<vmem>>, %arg10: memref<128x128xbf16, #tpu.memory_space<vmem>>, %arg11: memref<1x128xf32, #tpu.memory_space<vmem>>, %arg12: memref<128x64xbf16, #tpu.memory_space<vmem>>, %arg13: memref<1x64xf32, #tpu.memory_space<vmem>>, %arg14: memref<8x64xf32, #tpu.memory_space<vmem>>) attributes {dimension_semantics = [#tpu.dimension_semantics<parallel>], iteration_bounds = array<i64: 1>, scalar_prefetch = 0 : i64, scratch_operands = 0 : i64, tpu.core_type = #tpu.core_type<tc>, window_params = [{transform_indices = @transform_0, window_bounds = array<i64: 8, 64>}, {pipeline_mode = #tpu.pipeline_mode<synchronous>, transform_indices = @transform_1, window_bounds = array<i64: 64, 128>}, {pipeline_mode = #tpu.pipeline_mode<synchronous>, transform_indices = @transform_2, window_bounds = array<i64: 1, 128>}, {pipeline_mode = #tpu.pipeline_mode<synchronous>, transform_indices = @transform_3, window_bounds = array<i64: 128, 128>}, {pipeline_mode = #tpu.pipeline_mode<synchronous>, transform_indices = @transform_4, window_bounds = array<i64: 1, 128>}, {pipeline_mode = #tpu.pipeline_mode<synchronous>, transform_indices = @transform_5, window_bounds = array<i64: 128, 128>}, {pipeline_mode = #tpu.pipeline_mode<synchronous>, transform_indices = @transform_6, window_bounds = array<i64: 1, 128>}, {pipeline_mode = #tpu.pipeline_mode<synchronous>, transform_indices = @transform_7, window_bounds = array<i64: 128, 128>}, {pipeline_mode = #tpu.pipeline_mode<synchronous>, transform_indices = @transform_8, window_bounds = array<i64: 1, 128>}, {pipeline_mode = #tpu.pipeline_mode<synchronous>, transform_indices = @transform_9, window_bounds = array<i64: 128, 128>}, {pipeline_mode = #tpu.pipeline_mode<synchronous>, transform_indices = @transform_10, window_bounds = array<i64: 1, 128>}, {pipeline_mode = #tpu.pipeline_mode<synchronous>, transform_indices = @transform_11, window_bounds = array<i64: 128, 64>}, {pipeline_mode = #tpu.pipeline_mode<synchronous>, transform_indices = @transform_12, window_bounds = array<i64: 1, 64>}, {transform_indices = @transform_13, window_bounds = array<i64: 8, 64>}]} {
    %c0 = arith.constant 0 : index
    %c0_0 = arith.constant 0 : index
    %0 = vector.load %arg1[%c0, %c0_0] : memref<8x64xbf16, #tpu.memory_space<vmem>>, vector<8x64xbf16>
    %c0_1 = arith.constant 0 : index
    %c0_2 = arith.constant 0 : index
    %1 = vector.load %arg2[%c0_1, %c0_2] : memref<64x128xbf16, #tpu.memory_space<vmem>>, vector<64x128xbf16>
    %cst = arith.constant dense<0.000000e+00> : vector<8x128xf32>
    %2 = tpu.matmul %0, %1, %cst {dimension_numbers = #tpu.dot_dimension_numbers<[1], [0], [0], [1], [0, 0, 1, 1], [], []>} : vector<8x64xbf16>, vector<64x128xbf16>, vector<8x128xf32> -> vector<8x128xf32>
    %c0_3 = arith.constant 0 : index
    %c0_4 = arith.constant 0 : index
    %3 = vector.load %arg3[%c0_3, %c0_4] : memref<1x128xf32, #tpu.memory_space<vmem>>, vector<1x128xf32>
    %4 = vector.broadcast %3 : vector<1x128xf32> to vector<8x128xf32>
    %5 = arith.addf %2, %4 : vector<8x128xf32>
    %6 = arith.truncf %5 : vector<8x128xf32> to vector<8x128xbf16>
    %7 = math.tanh %6 : vector<8x128xbf16>
    %c0_5 = arith.constant 0 : index
    %c0_6 = arith.constant 0 : index
    %8 = vector.load %arg4[%c0_5, %c0_6] : memref<128x128xbf16, #tpu.memory_space<vmem>>, vector<128x128xbf16>
    %cst_7 = arith.constant dense<0.000000e+00> : vector<8x128xf32>
    %9 = tpu.matmul %7, %8, %cst_7 {dimension_numbers = #tpu.dot_dimension_numbers<[1], [0], [0], [1], [0, 0, 1, 1], [], []>} : vector<8x128xbf16>, vector<128x128xbf16>, vector<8x128xf32> -> vector<8x128xf32>
    %c0_8 = arith.constant 0 : index
    %c0_9 = arith.constant 0 : index
    %10 = vector.load %arg5[%c0_8, %c0_9] : memref<1x128xf32, #tpu.memory_space<vmem>>, vector<1x128xf32>
    %11 = vector.broadcast %10 : vector<1x128xf32> to vector<8x128xf32>
    %12 = arith.addf %9, %11 : vector<8x128xf32>
    %13 = arith.truncf %12 : vector<8x128xf32> to vector<8x128xbf16>
    %14 = math.tanh %13 : vector<8x128xbf16>
    %c0_10 = arith.constant 0 : index
    %c0_11 = arith.constant 0 : index
    %15 = vector.load %arg6[%c0_10, %c0_11] : memref<128x128xbf16, #tpu.memory_space<vmem>>, vector<128x128xbf16>
    %cst_12 = arith.constant dense<0.000000e+00> : vector<8x128xf32>
    %16 = tpu.matmul %14, %15, %cst_12 {dimension_numbers = #tpu.dot_dimension_numbers<[1], [0], [0], [1], [0, 0, 1, 1], [], []>} : vector<8x128xbf16>, vector<128x128xbf16>, vector<8x128xf32> -> vector<8x128xf32>
    %c0_13 = arith.constant 0 : index
    %c0_14 = arith.constant 0 : index
    %17 = vector.load %arg7[%c0_13, %c0_14] : memref<1x128xf32, #tpu.memory_space<vmem>>, vector<1x128xf32>
    %18 = vector.broadcast %17 : vector<1x128xf32> to vector<8x128xf32>
    %19 = arith.addf %16, %18 : vector<8x128xf32>
    %20 = arith.truncf %19 : vector<8x128xf32> to vector<8x128xbf16>
    %c0_15 = arith.constant 0 : index
    %c0_16 = arith.constant 0 : index
    %21 = vector.load %arg8[%c0_15, %c0_16] : memref<128x128xbf16, #tpu.memory_space<vmem>>, vector<128x128xbf16>
    %cst_17 = arith.constant dense<0.000000e+00> : vector<8x128xf32>
    %22 = tpu.matmul %20, %21, %cst_17 {dimension_numbers = #tpu.dot_dimension_numbers<[1], [0], [0], [1], [0, 0, 1, 1], [], []>} : vector<8x128xbf16>, vector<128x128xbf16>, vector<8x128xf32> -> vector<8x128xf32>
    %c0_18 = arith.constant 0 : index
    %c0_19 = arith.constant 0 : index
    %23 = vector.load %arg9[%c0_18, %c0_19] : memref<1x128xf32, #tpu.memory_space<vmem>>, vector<1x128xf32>
    %24 = vector.broadcast %23 : vector<1x128xf32> to vector<8x128xf32>
    %25 = arith.addf %22, %24 : vector<8x128xf32>
    %26 = arith.truncf %25 : vector<8x128xf32> to vector<8x128xbf16>
    %27 = math.tanh %26 : vector<8x128xbf16>
    %c0_20 = arith.constant 0 : index
    %c0_21 = arith.constant 0 : index
    %28 = vector.load %arg10[%c0_20, %c0_21] : memref<128x128xbf16, #tpu.memory_space<vmem>>, vector<128x128xbf16>
    %cst_22 = arith.constant dense<0.000000e+00> : vector<8x128xf32>
    %29 = tpu.matmul %27, %28, %cst_22 {dimension_numbers = #tpu.dot_dimension_numbers<[1], [0], [0], [1], [0, 0, 1, 1], [], []>} : vector<8x128xbf16>, vector<128x128xbf16>, vector<8x128xf32> -> vector<8x128xf32>
    %c0_23 = arith.constant 0 : index
    %c0_24 = arith.constant 0 : index
    %30 = vector.load %arg11[%c0_23, %c0_24] : memref<1x128xf32, #tpu.memory_space<vmem>>, vector<1x128xf32>
    %31 = vector.broadcast %30 : vector<1x128xf32> to vector<8x128xf32>
    %32 = arith.addf %29, %31 : vector<8x128xf32>
    %33 = arith.truncf %32 : vector<8x128xf32> to vector<8x128xbf16>
    %34 = math.tanh %33 : vector<8x128xbf16>
    %c0_25 = arith.constant 0 : index
    %c0_26 = arith.constant 0 : index
    %35 = vector.load %arg12[%c0_25, %c0_26] : memref<128x64xbf16, #tpu.memory_space<vmem>>, vector<128x64xbf16>
    %cst_27 = arith.constant dense<0.000000e+00> : vector<8x64xf32>
    %36 = tpu.matmul %34, %35, %cst_27 {dimension_numbers = #tpu.dot_dimension_numbers<[1], [0], [0], [1], [0, 0, 1, 1], [], []>} : vector<8x128xbf16>, vector<128x64xbf16>, vector<8x64xf32> -> vector<8x64xf32>
    %c0_28 = arith.constant 0 : index
    %c0_29 = arith.constant 0 : index
    %37 = vector.load %arg13[%c0_28, %c0_29] : memref<1x64xf32, #tpu.memory_space<vmem>>, vector<1x64xf32>
    %38 = vector.broadcast %37 : vector<1x64xf32> to vector<8x64xf32>
    %39 = arith.addf %36, %38 : vector<8x64xf32>
    %c0_30 = arith.constant 0 : index
    %c0_31 = arith.constant 0 : index
    %40 = vector.load %arg14[%c0_30, %c0_31] : memref<8x64xf32, #tpu.memory_space<vmem>>, vector<8x64xf32>
    tpu.vector_store %arg14[%c0_30, %c0_31], %39 {strides = array<i32>} : memref<8x64xf32, #tpu.memory_space<vmem>>, vector<8x64xf32>,
    return
  }
  func.func @transform_0(%arg0: i32) -> (i32, i32) {
    %c0_i32 = arith.constant 0 : i32
    %c0_i32_0 = arith.constant 0 : i32
    return %arg0, %c0_i32 : i32, i32
  }
  func.func @transform_1(%arg0: i32) -> (i32, i32) {
    %c0_i32 = arith.constant 0 : i32
    %c0_i32_0 = arith.constant 0 : i32
    %c0_i32_1 = arith.constant 0 : i32
    return %c0_i32, %c0_i32_0 : i32, i32
  }
  func.func @transform_2(%arg0: i32) -> (i32, i32) {
    %c0_i32 = arith.constant 0 : i32
    %c0_i32_0 = arith.constant 0 : i32
    %c0_i32_1 = arith.constant 0 : i32
    return %c0_i32, %c0_i32_0 : i32, i32
  }
  func.func @transform_3(%arg0: i32) -> (i32, i32) {
    %c0_i32 = arith.constant 0 : i32
    %c0_i32_0 = arith.constant 0 : i32
    %c0_i32_1 = arith.constant 0 : i32
    return %c0_i32, %c0_i32_0 : i32, i32
  }
  func.func @transform_4(%arg0: i32) -> (i32, i32) {
    %c0_i32 = arith.constant 0 : i32
    %c0_i32_0 = arith.constant 0 : i32
    %c0_i32_1 = arith.constant 0 : i32
    return %c0_i32, %c0_i32_0 : i32, i32
  }
  func.func @transform_5(%arg0: i32) -> (i32, i32) {
    %c0_i32 = arith.constant 0 : i32
    %c0_i32_0 = arith.constant 0 : i32
    %c0_i32_1 = arith.constant 0 : i32
    return %c0_i32, %c0_i32_0 : i32, i32
  }
  func.func @transform_6(%arg0: i32) -> (i32, i32) {
    %c0_i32 = arith.constant 0 : i32
    %c0_i32_0 = arith.constant 0 : i32
    %c0_i32_1 = arith.constant 0 : i32
    return %c0_i32, %c0_i32_0 : i32, i32
  }
  func.func @transform_7(%arg0: i32) -> (i32, i32) {
    %c0_i32 = arith.constant 0 : i32
    %c0_i32_0 = arith.constant 0 : i32
    %c0_i32_1 = arith.constant 0 : i32
    return %c0_i32, %c0_i32_0 : i32, i32
  }
  func.func @transform_8(%arg0: i32) -> (i32, i32) {
    %c0_i32 = arith.constant 0 : i32
    %c0_i32_0 = arith.constant 0 : i32
    %c0_i32_1 = arith.constant 0 : i32
    return %c0_i32, %c0_i32_0 : i32, i32
  }
  func.func @transform_9(%arg0: i32) -> (i32, i32) {
    %c0_i32 = arith.constant 0 : i32
    %c0_i32_0 = arith.constant 0 : i32
    %c0_i32_1 = arith.constant 0 : i32
    return %c0_i32, %c0_i32_0 : i32, i32
  }
  func.func @transform_10(%arg0: i32) -> (i32, i32) {
    %c0_i32 = arith.constant 0 : i32
    %c0_i32_0 = arith.constant 0 : i32
    %c0_i32_1 = arith.constant 0 : i32
    return %c0_i32, %c0_i32_0 : i32, i32
  }
  func.func @transform_11(%arg0: i32) -> (i32, i32) {
    %c0_i32 = arith.constant 0 : i32
    %c0_i32_0 = arith.constant 0 : i32
    %c0_i32_1 = arith.constant 0 : i32
    return %c0_i32, %c0_i32_0 : i32, i32
  }
  func.func @transform_12(%arg0: i32) -> (i32, i32) {
    %c0_i32 = arith.constant 0 : i32
    %c0_i32_0 = arith.constant 0 : i32
    %c0_i32_1 = arith.constant 0 : i32
    return %c0_i32, %c0_i32_0 : i32, i32
  }
  func.func @transform_13(%arg0: i32) -> (i32, i32) {
    %c0_i32 = arith.constant 0 : i32
    %c0_i32_0 = arith.constant 0 : i32
    return %arg0, %c0_i32 : i32, i32
  }
}

</mosaic_0001>

<llo_original>
// kernel: tpu_custom_call.1
$region0: #{tpu_custom_call.1}
  #allocation0 [shape = 'u32[]', space=smem, size = 0x4, offset = 0x4, fixed_abs, tag = 'smem constant byte address 0x4 - core index']
  #allocation1 [shape = 'u32[144,128]{1,0:T(1,128)}', space=vmem, size = 0x12000, scoped, tag = 'internal scratch']
  %s0 = inlined_call_operand.hbm [shape: bf16[8,64], index: 0, kind: input, shape index: {}]
  %s1 = inlined_call_operand.hbm [shape: bf16[64,128], index: 1, kind: input, shape index: {}]
  %s2 = inlined_call_operand.vmem [shape: f32[1,128], index: 2, kind: input, shape index: {}]
  %s3 = inlined_call_operand.vmem [shape: bf16[128,128], index: 3, kind: input, shape index: {}]
  %s4 = inlined_call_operand.vmem [shape: f32[1,128], index: 4, kind: input, shape index: {}]
  %s5 = inlined_call_operand.hbm [shape: bf16[128,128], index: 5, kind: input, shape index: {}]
  %s6 = inlined_call_operand.hbm [shape: f32[1,128], index: 6, kind: input, shape index: {}]
  %s7 = inlined_call_operand.hbm [shape: bf16[128,128], index: 7, kind: input, shape index: {}]
  %s8 = inlined_call_operand.hbm [shape: f32[1,128], index: 8, kind: input, shape index: {}]
  %s9 = inlined_call_operand.vmem [shape: bf16[128,128], index: 9, kind: input, shape index: {}]
  %s10 = inlined_call_operand.vmem [shape: f32[1,128], index: 10, kind: input, shape index: {}]
  %s11 = inlined_call_operand.vmem [shape: bf16[128,64], index: 11, kind: input, shape index: {}]
  %s12 = inlined_call_operand.vmem [shape: f32[1,64], index: 12, kind: input, shape index: {}]
  %s13 = inlined_call_operand.hbm [shape: f32[8,64], index: 13, kind: output, shape index: {}]
  %s14 = sld [smem:[#allocation0]]
  $region86: #{tpu_custom_call.1} parent=0
    _
  %s16 = ssub.s32 1, %s14
  %s17 = scalar_select 0, %s16, %s14
  $region1: #{tpu_custom_call.1} parent=0
    #allocation2 [shape = 'u8[2048]{0}', space=vmem, size = 0x800, scoped, tag = 'input window, operand 0, single buffered']
    #allocation3 [shape = 's32[1]{0}', space=sflag, size = 0x4, scoped, tag = 'scoped memory for tpu_custom_call.1']
    #allocation4 [shape = 's32[1]{0}', space=sflag, size = 0x4, scoped, tag = 'scoped memory for tpu_custom_call.1']
    #allocation5 [shape = 'u8[16384]{0}', space=vmem, size = 0x4000, scoped, tag = 'input window, operand 1, single buffered']
    #allocation6 [shape = 's32[1]{0}', space=sflag, size = 0x4, scoped, tag = 'scoped memory for tpu_custom_call.1']
    #allocation7 [shape = 'u8[32768]{0}', space=vmem, size = 0x8000, scoped, tag = 'input window, operand 5, single buffered']
    #allocation8 [shape = 'u8[512]{0}', space=vmem, size = 0x400, scoped, tag = 'input window, operand 6, single buffered']
    #allocation9 [shape = 's32[1]{0}', space=sflag, size = 0x4, scoped, tag = 'scoped memory for tpu_custom_call.1']
    #allocation10 [shape = 'u8[32768]{0}', space=vmem, size = 0x8000, scoped, tag = 'input window, operand 7, single buffered']
    #allocation11 [shape = 'u8[512]{0}', space=vmem, size = 0x400, scoped, tag = 'input window, operand 8, single buffered']
    #allocation12 [shape = 's32[1]{0}', space=sflag, size = 0x4, scoped, tag = 'scoped memory for tpu_custom_call.1']
    #allocation13 [shape = 'u8[4096]{0}', space=vmem, size = 0x1000, scoped, tag = 'output window, operand 0, single buffered']
    %18 = vsyncpa [#allocation3], 0
    %19 = vsyncpa [#allocation6], 0
    %20 = vsyncpa [#allocation9], 0
    %21 = vsyncpa [#allocation12], 0
    %22 = vsyncpa [#allocation4], 0
    // Predicated region
    $region2: #{tpu_custom_call.1} parent=1 // pred_check
      _
    $region3: #{tpu_custom_call.1} parent=1 // pred_check_branch
      %24 = sbr.rel (0) target = $region5
    $region4: #{tpu_custom_call.1} parent=1 // pred_region
      %s26 = ssub.s32 64, 64
      %27 = vsyncadd [#allocation3], %s26
      %s29 = sshll.u32 [#allocation2], 4
      %s30 = int_to_ptr.vmem [resolvable:$true] %s29
      %32 = dma.hbm_to_vmem [thread:$0]  %s0, 64, %s30, [#allocation3]
    $region5: #{tpu_custom_call.1} parent=1 // pred_fallthru
      _
    // Predicated region
    $region6: #{tpu_custom_call.1} parent=1 // pred_check
      _
    $region7: #{tpu_custom_call.1} parent=1 // pred_check_branch
      %34 = sbr.rel (0) target = $region9
    $region8: #{tpu_custom_call.1} parent=1 // pred_region
      %s36 = ssub.s32 512, 512
      %37 = vsyncadd [#allocation6], %s36
      %s38 = sshll.u32 [#allocation5], 4
      %s39 = int_to_ptr.vmem [resolvable:$true] %s38
      %44 = dma.hbm_to_vmem [thread:$0]  %s1, 512, %s39, [#allocation6], 64, 64, 4
    $region9: #{tpu_custom_call.1} parent=1 // pred_fallthru
      _
    // Predicated region
    $region10: #{tpu_custom_call.1} parent=1 // pred_check
      _
    $region11: #{tpu_custom_call.1} parent=1 // pred_check_branch
      %46 = sbr.rel (0) target = $region13
    $region12: #{tpu_custom_call.1} parent=1 // pred_region
      _
    $region13: #{tpu_custom_call.1} parent=1 // pred_fallthru
      _
    // Predicated region
    $region14: #{tpu_custom_call.1} parent=1 // pred_check
      _
    $region15: #{tpu_custom_call.1} parent=1 // pred_check_branch
      %48 = sbr.rel (0) target = $region17
    $region16: #{tpu_custom_call.1} parent=1 // pred_region
      _
    $region17: #{tpu_custom_call.1} parent=1 // pred_fallthru
      _
    // Predicated region
    $region18: #{tpu_custom_call.1} parent=1 // pred_check
      _
    $region19: #{tpu_custom_call.1} parent=1 // pred_check_branch
      %50 = sbr.rel (0) target = $region21
    $region20: #{tpu_custom_call.1} parent=1 // pred_region
      _
    $region21: #{tpu_custom_call.1} parent=1 // pred_fallthru
      _
    // Predicated region
    $region22: #{tpu_custom_call.1} parent=1 // pred_check
      _
    $region23: #{tpu_custom_call.1} parent=1 // pred_check_branch
      %52 = sbr.rel (0) target = $region25
    $region24: #{tpu_custom_call.1} parent=1 // pred_region
      %s54 = ssub.s32 1024, 1024
      %55 = vsyncadd [#allocation6], %s54
      %s56 = sshll.u32 [#allocation7], 4
      %s57 = int_to_ptr.vmem [resolvable:$true] %s56
      %62 = dma.hbm_to_vmem [thread:$0]  %s5, 1024, %s57, [#allocation6], 64, 64, 4
    $region25: #{tpu_custom_call.1} parent=1 // pred_fallthru
      _
    // Predicated region
    $region26: #{tpu_custom_call.1} parent=1 // pred_check
      _
    $region27: #{tpu_custom_call.1} parent=1 // pred_check_branch
      %64 = sbr.rel (0) target = $region29
    $region28: #{tpu_custom_call.1} parent=1 // pred_region
      %s66 = ssub.s32 16, 16
      %67 = vsyncadd [#allocation9], %s66
      %s69 = sshll.u32 [#allocation8], 4
      %s70 = int_to_ptr.vmem [resolvable:$true] %s69
      %72 = dma.hbm_to_vmem [thread:$0]  %s6, 16, %s70, [#allocation9]
    $region29: #{tpu_custom_call.1} parent=1 // pred_fallthru
      _
    // Predicated region
    $region30: #{tpu_custom_call.1} parent=1 // pred_check
      _
    $region31: #{tpu_custom_call.1} parent=1 // pred_check_branch
      %74 = sbr.rel (0) target = $region33
    $region32: #{tpu_custom_call.1} parent=1 // pred_region
      %s76 = ssub.s32 1024, 1024
      %77 = vsyncadd [#allocation9], %s76
      %s78 = sshll.u32 [#allocation10], 4
      %s79 = int_to_ptr.vmem [resolvable:$true] %s78
      %84 = dma.hbm_to_vmem [thread:$0]  %s7, 1024, %s79, [#allocation9], 64, 64, 4
    $region33: #{tpu_custom_call.1} parent=1 // pred_fallthru
      _
    // Predicated region
    $region34: #{tpu_custom_call.1} parent=1 // pred_check
      _
    $region35: #{tpu_custom_call.1} parent=1 // pred_check_branch
      %86 = sbr.rel (0) target = $region37
    $region36: #{tpu_custom_call.1} parent=1 // pred_region
      %s88 = ssub.s32 16, 16
      %89 = vsyncadd [#allocation12], %s88
      %s91 = sshll.u32 [#allocation11], 4
      %s92 = int_to_ptr.vmem [resolvable:$true] %s91
      %94 = dma.hbm_to_vmem [thread:$0]  %s8, 16, %s92, [#allocation12]
    $region37: #{tpu_custom_call.1} parent=1 // pred_fallthru
      _
    // Predicated region
    $region38: #{tpu_custom_call.1} parent=1 // pred_check
      _
    $region39: #{tpu_custom_call.1} parent=1 // pred_check_branch
      %96 = sbr.rel (0) target = $region41
    $region40: #{tpu_custom_call.1} parent=1 // pred_region
      _
    $region41: #{tpu_custom_call.1} parent=1 // pred_fallthru
      _
    // Predicated region
    $region42: #{tpu_custom_call.1} parent=1 // pred_check
      _
    $region43: #{tpu_custom_call.1} parent=1 // pred_check_branch
      %98 = sbr.rel (0) target = $region45
    $region44: #{tpu_custom_call.1} parent=1 // pred_region
      _
    $region45: #{tpu_custom_call.1} parent=1 // pred_fallthru
      _
    // Predicated region
    $region46: #{tpu_custom_call.1} parent=1 // pred_check
      _
    $region47: #{tpu_custom_call.1} parent=1 // pred_check_branch
      %100 = sbr.rel (0) target = $region49
    $region48: #{tpu_custom_call.1} parent=1 // pred_region
      _
    $region49: #{tpu_custom_call.1} parent=1 // pred_fallthru
      _
    // Predicated region
    $region50: #{tpu_custom_call.1} parent=1 // pred_check
      _
    $region51: #{tpu_custom_call.1} parent=1 // pred_check_branch
      %102 = sbr.rel (0) target = $region53
    $region52: #{tpu_custom_call.1} parent=1 // pred_region
      _
    $region53: #{tpu_custom_call.1} parent=1 // pred_fallthru
      _
    // Predicated region
    $region54: #{tpu_custom_call.1} parent=1 // pred_check
      _
    $region55: #{tpu_custom_call.1} parent=1 // pred_check_branch
      %104 = sbr.rel (0) target = $region57
    $region56: #{tpu_custom_call.1} parent=1 // pred_region
      %105 = dma.done [#allocation3], 64
    $region57: #{tpu_custom_call.1} parent=1 // pred_fallthru
      _
    // Predicated region
    $region58: #{tpu_custom_call.1} parent=1 // pred_check
      _
    $region59: #{tpu_custom_call.1} parent=1 // pred_check_branch
      %107 = sbr.rel (0) target = $region61
    $region60: #{tpu_custom_call.1} parent=1 // pred_region
      %108 = dma.done [#allocation6], 512
    $region61: #{tpu_custom_call.1} parent=1 // pred_fallthru
      _
    // Predicated region
    $region62: #{tpu_custom_call.1} parent=1 // pred_check
      _
    $region63: #{tpu_custom_call.1} parent=1 // pred_check_branch
      %110 = sbr.rel (0) target = $region65
    $region64: #{tpu_custom_call.1} parent=1 // pred_region
      %111 = dma.done [#allocation6], 1024
    $region65: #{tpu_custom_call.1} parent=1 // pred_fallthru
      _
    // Predicated region
    $region66: #{tpu_custom_call.1} parent=1 // pred_check
      _
    $region67: #{tpu_custom_call.1} parent=1 // pred_check_branch
      %113 = sbr.rel (0) target = $region69
    $region68: #{tpu_custom_call.1} parent=1 // pred_region
      %114 = dma.done [#allocation9], 16
    $region69: #{tpu_custom_call.1} parent=1 // pred_fallthru
      _
    // Predicated region
    $region70: #{tpu_custom_call.1} parent=1 // pred_check
      _
    $region71: #{tpu_custom_call.1} parent=1 // pred_check_branch
      %116 = sbr.rel (0) target = $region73
    $region72: #{tpu_custom_call.1} parent=1 // pred_region
      %117 = dma.done [#allocation9], 1024
    $region73: #{tpu_custom_call.1} parent=1 // pred_fallthru
      _
    // Predicated region
    $region74: #{tpu_custom_call.1} parent=1 // pred_check
      _
    $region75: #{tpu_custom_call.1} parent=1 // pred_check_branch
      %119 = sbr.rel (0) target = $region77
    $region76: #{tpu_custom_call.1} parent=1 // pred_region
      %120 = dma.done [#allocation12], 16
    $region77: #{tpu_custom_call.1} parent=1 // pred_fallthru
      _
    %v122 = vld [vmem:[#allocation2] sm:$0xf]
    %v123 = vld [vmem:[#allocation5] sm:$0xf]
    %v124 = vld [vmem:[#allocation5 + $0x4] sm:$0xf]
    %v125 = vld [vmem:[#allocation5 + $0x8] sm:$0xf]
    %v126 = vld [vmem:[#allocation5 + $0xc] sm:$0xf]
    %v127 = vld [vmem:[#allocation5 + $0x10] sm:$0xf]
    %v128 = vld [vmem:[#allocation5 + $0x14] sm:$0xf]
    %v129 = vld [vmem:[#allocation5 + $0x18] sm:$0xf]
    %v130 = vld [vmem:[#allocation5 + $0x1c] sm:$0xf]
    %v131 = vld [vmem:[%s2] sm:$0x1]
    %v133 = vlaneseq
    %v134 = vshrl.u32 %v133, 7
    %v135 = vsub.s32 0, %v134
    %v136 = vrot.slane %v131, %v135
    %v146 = vunpack.c.l.b16 %v123
    %v147 = vunpack.c.l.b16 %v124
    %v148 = vunpack.c.l.b16 %v125
    %v149 = vunpack.c.l.b16 %v126
    %v150 = vunpack.c.l.b16 %v127
    %v151 = vunpack.c.l.b16 %v128
    %v152 = vunpack.c.l.b16 %v129
    %v153 = vunpack.c.l.b16 %v130
    %v154 = vpack.c.b16 %v147, %v146
    %v155 = vpack.c.b16 %v149, %v148
    %v156 = vpack.c.b16 %v151, %v150
    %v157 = vpack.c.b16 %v153, %v152
    %vm162 = vcmask 523264
    %v164 = vsel %vm162, %v122, 0
    %166 = vmatprep.subr.bf16.mxu0 0
    %167 = vmatpush1.bf16.msra.mxu0 %v154
    %168 = vmatprep.subr.bf16.mxu0 0
    %169 = vmatpush1.bf16.msra.mxu0 %v155
    %170 = vmatprep.subr.bf16.mxu0 0
    %171 = vmatpush1.bf16.msra.mxu0 %v156
    %172 = vmatprep.subr.bf16.mxu0 0
    %173 = vmatpush1.bf16.msra.mxu0 %v157
    %174 = vmatprep.subr.bf16.mxu0 0
    %175 = vmatpush1.bf16.msra.mxu0 0
    %176 = vmatprep.subr.bf16.mxu0 0
    %177 = vmatpush1.bf16.msra.mxu0 0
    %178 = vmatprep.subr.bf16.mxu0 0
    %179 = vmatpush1.bf16.msra.mxu0 0
    %180 = vmatprep.subr.bf16.mxu0 0
    %181 = vmatpush1.bf16.msra.mxu0 0
    %182 = vmatprep.subr.bf16.mxu0 0
    %183 = vmatpush1.bf16.msra.mxu0 0
    %184 = vmatprep.subr.bf16.mxu0 0
    %185 = vmatpush1.bf16.msra.mxu0 0
    %186 = vmatprep.subr.bf16.mxu0 0
    %187 = vmatpush1.bf16.msra.mxu0 0
    %188 = vmatprep.subr.bf16.mxu0 0
    %189 = vmatpush1.bf16.msra.mxu0 0
    %190 = vmatprep.subr.bf16.mxu0 0
    %191 = vmatpush1.bf16.msra.mxu0 0
    %192 = vmatprep.subr.bf16.mxu0 0
    %193 = vmatpush1.bf16.msra.mxu0 0
    %194 = vmatprep.subr.bf16.mxu0 0
    %195 = vmatpush1.bf16.msra.mxu0 0
    %196 = vmatprep.subr.bf16.mxu0 0
    %197 = vmatpush1.bf16.msra.mxu0 0
    %198 = vmatprep.mubr.bf16.mxu0 0
    %199 = vmatmul.mubr.bf16.gmra.mrb[0].mxu0 %v164
    %v200 = vpop.f32.mrb[0].mxu0
    %v201 = vadd.f32 %v136, %v200
    %v202 = vpop.f32.mrb[0].mxu0
    %v203 = vpop.f32.mrb[0].mxu0
    %v204 = vpop.f32.mrb[0].mxu0
    %205 = vdwg.mxu0
    %v206 = vpack.c.bf16 %v201, %v201
    %v207 = vtanh.bf16.pop %v206
    %v208 = vld [vmem:[%s3] sm:$0xf]
    %v209 = vld [vmem:[%s3 + $0x4] sm:$0xf]
    %v210 = vld [vmem:[%s3 + $0x8] sm:$0xf]
    %v211 = vld [vmem:[%s3 + $0xc] sm:$0xf]
    %v212 = vld [vmem:[%s3 + $0x10] sm:$0xf]
    %v213 = vld [vmem:[%s3 + $0x14] sm:$0xf]
    %v214 = vld [vmem:[%s3 + $0x18] sm:$0xf]
    %v215 = vld [vmem:[%s3 + $0x1c] sm:$0xf]
    %v216 = vld [vmem:[%s3 + $0x20] sm:$0xf]
    %v217 = vld [vmem:[%s3 + $0x24] sm:$0xf]
    %v218 = vld [vmem:[%s3 + $0x28] sm:$0xf]
    %v219 = vld [vmem:[%s3 + $0x2c] sm:$0xf]
    %v220 = vld [vmem:[%s3 + $0x30] sm:$0xf]
    %v221 = vld [vmem:[%s3 + $0x34] sm:$0xf]
    %v222 = vld [vmem:[%s3 + $0x38] sm:$0xf]
    %v223 = vld [vmem:[%s3 + $0x3c] sm:$0xf]
    %v224 = vld [vmem:[%s4] sm:$0x1]
    %v226 = vlaneseq
    %v227 = vshrl.u32 %v226, 7
    %v228 = vsub.s32 0, %v227
    %v229 = vrot.slane %v224, %v228
    %v247 = vunpack.c.l.b16 %v208
    %v248 = vunpack.c.l.b16 %v209
    %v249 = vunpack.c.l.b16 %v210
    %v250 = vunpack.c.l.b16 %v211
    %v251 = vunpack.c.l.b16 %v212
    %v252 = vunpack.c.l.b16 %v213
    %v253 = vunpack.c.l.b16 %v214
    %v254 = vunpack.c.l.b16 %v215
    %v255 = vunpack.c.l.b16 %v216
    %v256 = vunpack.c.l.b16 %v217
    %v257 = vunpack.c.l.b16 %v218
    %v258 = vunpack.c.l.b16 %v219
    %v259 = vunpack.c.l.b16 %v220
    %v260 = vunpack.c.l.b16 %v221
    %v261 = vunpack.c.l.b16 %v222
    %v262 = vunpack.c.l.b16 %v223
    %v263 = vpack.c.b16 %v248, %v247
    %v264 = vpack.c.b16 %v250, %v249
    %v265 = vpack.c.b16 %v252, %v251
    %v266 = vpack.c.b16 %v254, %v253
    %v267 = vpack.c.b16 %v256, %v255
    %v268 = vpack.c.b16 %v258, %v257
    %v269 = vpack.c.b16 %v260, %v259
    %v270 = vpack.c.b16 %v262, %v261
    %279 = vmatprep.subr.bf16.mxu0 0
    %280 = vmatpush1.bf16.msra.mxu0 %v263
    %281 = vmatprep.subr.bf16.mxu0 0
    %282 = vmatpush1.bf16.msra.mxu0 %v264
    %283 = vmatprep.subr.bf16.mxu0 0
    %284 = vmatpush1.bf16.msra.mxu0 %v265
    %285 = vmatprep.subr.bf16.mxu0 0
    %286 = vmatpush1.bf16.msra.mxu0 %v266
    %287 = vmatprep.subr.bf16.mxu0 0
    %288 = vmatpush1.bf16.msra.mxu0 %v267
    %289 = vmatprep.subr.bf16.mxu0 0
    %290 = vmatpush1.bf16.msra.mxu0 %v268
    %291 = vmatprep.subr.bf16.mxu0 0
    %292 = vmatpush1.bf16.msra.mxu0 %v269
    %293 = vmatprep.subr.bf16.mxu0 0
    %294 = vmatpush1.bf16.msra.mxu0 %v270
    %295 = vmatprep.subr.bf16.mxu0 0
    %296 = vmatpush1.bf16.msra.mxu0 0
    %297 = vmatprep.subr.bf16.mxu0 0
    %298 = vmatpush1.bf16.msra.mxu0 0
    %299 = vmatprep.subr.bf16.mxu0 0
    %300 = vmatpush1.bf16.msra.mxu0 0
    %301 = vmatprep.subr.bf16.mxu0 0
    %302 = vmatpush1.bf16.msra.mxu0 0
    %303 = vmatprep.subr.bf16.mxu0 0
    %304 = vmatpush1.bf16.msra.mxu0 0
    %305 = vmatprep.subr.bf16.mxu0 0
    %306 = vmatpush1.bf16.msra.mxu0 0
    %307 = vmatprep.subr.bf16.mxu0 0
    %308 = vmatpush1.bf16.msra.mxu0 0
    %309 = vmatprep.subr.bf16.mxu0 0
    %310 = vmatpush1.bf16.msra.mxu0 0
    %311 = vmatprep.mubr.bf16.mxu0 0
    %312 = vmatmul.mubr.bf16.gmra.mrb[0].mxu0 %v207
    %v313 = vpop.f32.mrb[0].mxu0
    %v314 = vadd.f32 %v229, %v313
    %v315 = vpop.f32.mrb[0].mxu0
    %v316 = vpop.f32.mrb[0].mxu0
    %v317 = vpop.f32.mrb[0].mxu0
    %318 = vdwg.mxu0
    %v319 = vpack.c.bf16 %v314, %v314
    %v320 = vtanh.bf16.pop %v319
    %v321 = vld [vmem:[#allocation7] sm:$0xf]
    %v322 = vld [vmem:[#allocation7 + $0x4] sm:$0xf]
    %v323 = vld [vmem:[#allocation7 + $0x8] sm:$0xf]
    %v324 = vld [vmem:[#allocation7 + $0xc] sm:$0xf]
    %v325 = vld [vmem:[#allocation7 + $0x10] sm:$0xf]
    %v326 = vld [vmem:[#allocation7 + $0x14] sm:$0xf]
    %v327 = vld [vmem:[#allocation7 + $0x18] sm:$0xf]
    %v328 = vld [vmem:[#allocation7 + $0x1c] sm:$0xf]
    %v329 = vld [vmem:[#allocation7 + $0x20] sm:$0xf]
    %v330 = vld [vmem:[#allocation7 + $0x24] sm:$0xf]
    %v331 = vld [vmem:[#allocation7 + $0x28] sm:$0xf]
    %v332 = vld [vmem:[#allocation7 + $0x2c] sm:$0xf]
    %v333 = vld [vmem:[#allocation7 + $0x30] sm:$0xf]
    %v334 = vld [vmem:[#allocation7 + $0x34] sm:$0xf]
    %v335 = vld [vmem:[#allocation7 + $0x38] sm:$0xf]
    %v336 = vld [vmem:[#allocation7 + $0x3c] sm:$0xf]
    %v337 = vld [vmem:[#allocation8] sm:$0x1]
    %v339 = vlaneseq
    %v340 = vshrl.u32 %v339, 7
    %v341 = vsub.s32 0, %v340
    %v342 = vrot.slane %v337, %v341
    %v360 = vunpack.c.l.b16 %v321
    %v361 = vunpack.c.l.b16 %v322
    %v362 = vunpack.c.l.b16 %v323
    %v363 = vunpack.c.l.b16 %v324
    %v364 = vunpack.c.l.b16 %v325
    %v365 = vunpack.c.l.b16 %v326
    %v366 = vunpack.c.l.b16 %v327
    %v367 = vunpack.c.l.b16 %v328
    %v368 = vunpack.c.l.b16 %v329
    %v369 = vunpack.c.l.b16 %v330
    %v370 = vunpack.c.l.b16 %v331
    %v371 = vunpack.c.l.b16 %v332
    %v372 = vunpack.c.l.b16 %v333
    %v373 = vunpack.c.l.b16 %v334
    %v374 = vunpack.c.l.b16 %v335
    %v375 = vunpack.c.l.b16 %v336
    %v376 = vpack.c.b16 %v361, %v360
    %v377 = vpack.c.b16 %v363, %v362
    %v378 = vpack.c.b16 %v365, %v364
    %v379 = vpack.c.b16 %v367, %v366
    %v380 = vpack.c.b16 %v369, %v368
    %v381 = vpack.c.b16 %v371, %v370
    %v382 = vpack.c.b16 %v373, %v372
    %v383 = vpack.c.b16 %v375, %v374
    %392 = vmatprep.subr.bf16.mxu0 0
    %393 = vmatpush1.bf16.msra.mxu0 %v376
    %394 = vmatprep.subr.bf16.mxu0 0
    %395 = vmatpush1.bf16.msra.mxu0 %v377
    %396 = vmatprep.subr.bf16.mxu0 0
    %397 = vmatpush1.bf16.msra.mxu0 %v378
    %398 = vmatprep.subr.bf16.mxu0 0
    %399 = vmatpush1.bf16.msra.mxu0 %v379
    %400 = vmatprep.subr.bf16.mxu0 0
    %401 = vmatpush1.bf16.msra.mxu0 %v380
    %402 = vmatprep.subr.bf16.mxu0 0
    %403 = vmatpush1.bf16.msra.mxu0 %v381
    %404 = vmatprep.subr.bf16.mxu0 0
    %405 = vmatpush1.bf16.msra.mxu0 %v382
    %406 = vmatprep.subr.bf16.mxu0 0
    %407 = vmatpush1.bf16.msra.mxu0 %v383
    %408 = vmatprep.subr.bf16.mxu0 0
    %409 = vmatpush1.bf16.msra.mxu0 0
    %410 = vmatprep.subr.bf16.mxu0 0
    %411 = vmatpush1.bf16.msra.mxu0 0
    %412 = vmatprep.subr.bf16.mxu0 0
    %413 = vmatpush1.bf16.msra.mxu0 0
    %414 = vmatprep.subr.bf16.mxu0 0
    %415 = vmatpush1.bf16.msra.mxu0 0
    %416 = vmatprep.subr.bf16.mxu0 0
    %417 = vmatpush1.bf16.msra.mxu0 0
    %418 = vmatprep.subr.bf16.mxu0 0
    %419 = vmatpush1.bf16.msra.mxu0 0
    %420 = vmatprep.subr.bf16.mxu0 0
    %421 = vmatpush1.bf16.msra.mxu0 0
    %422 = vmatprep.subr.bf16.mxu0 0
    %423 = vmatpush1.bf16.msra.mxu0 0
    %424 = vmatprep.mubr.bf16.mxu0 0
    %425 = vmatmul.mubr.bf16.gmra.mrb[0].mxu0 %v320
    %v426 = vpop.f32.mrb[0].mxu0
    %v427 = vadd.f32 %v342, %v426
    %v428 = vpop.f32.mrb[0].mxu0
    %v429 = vpop.f32.mrb[0].mxu0
    %v430 = vpop.f32.mrb[0].mxu0
    %431 = vdwg.mxu0
    %v432 = vpack.c.bf16 %v427, %v427
    %v433 = vld [vmem:[#allocation10] sm:$0xf]
    %v434 = vld [vmem:[#allocation10 + $0x4] sm:$0xf]
    %v435 = vld [vmem:[#allocation10 + $0x8] sm:$0xf]
    %v436 = vld [vmem:[#allocation10 + $0xc] sm:$0xf]
    %v437 = vld [vmem:[#allocation10 + $0x10] sm:$0xf]
    %v438 = vld [vmem:[#allocation10 + $0x14] sm:$0xf]
    %v439 = vld [vmem:[#allocation10 + $0x18] sm:$0xf]
    %v440 = vld [vmem:[#allocation10 + $0x1c] sm:$0xf]
    %v441 = vld [vmem:[#allocation10 + $0x20] sm:$0xf]
    %v442 = vld [vmem:[#allocation10 + $0x24] sm:$0xf]
    %v443 = vld [vmem:[#allocation10 + $0x28] sm:$0xf]
    %v444 = vld [vmem:[#allocation10 + $0x2c] sm:$0xf]
    %v445 = vld [vmem:[#allocation10 + $0x30] sm:$0xf]
    %v446 = vld [vmem:[#allocation10 + $0x34] sm:$0xf]
    %v447 = vld [vmem:[#allocation10 + $0x38] sm:$0xf]
    %v448 = vld [vmem:[#allocation10 + $0x3c] sm:$0xf]
    %v449 = vld [vmem:[#allocation11] sm:$0x1]
    %v451 = vlaneseq
    %v452 = vshrl.u32 %v451, 7
    %v453 = vsub.s32 0, %v452
    %v454 = vrot.slane %v449, %v453
    %v472 = vunpack.c.l.b16 %v433
    %v473 = vunpack.c.l.b16 %v434
    %v474 = vunpack.c.l.b16 %v435
    %v475 = vunpack.c.l.b16 %v436
    %v476 = vunpack.c.l.b16 %v437
    %v477 = vunpack.c.l.b16 %v438
    %v478 = vunpack.c.l.b16 %v439
    %v479 = vunpack.c.l.b16 %v440
    %v480 = vunpack.c.l.b16 %v441
    %v481 = vunpack.c.l.b16 %v442
    %v482 = vunpack.c.l.b16 %v443
    %v483 = vunpack.c.l.b16 %v444
    %v484 = vunpack.c.l.b16 %v445
    %v485 = vunpack.c.l.b16 %v446
    %v486 = vunpack.c.l.b16 %v447
    %v487 = vunpack.c.l.b16 %v448
    %v488 = vpack.c.b16 %v473, %v472
    %v489 = vpack.c.b16 %v475, %v474
    %v490 = vpack.c.b16 %v477, %v476
    %v491 = vpack.c.b16 %v479, %v478
    %v492 = vpack.c.b16 %v481, %v480
    %v493 = vpack.c.b16 %v483, %v482
    %v494 = vpack.c.b16 %v485, %v484
    %v495 = vpack.c.b16 %v487, %v486
    %504 = vmatprep.subr.bf16.mxu0 0
    %505 = vmatpush1.bf16.msra.mxu0 %v488
    %506 = vmatprep.subr.bf16.mxu0 0
    %507 = vmatpush1.bf16.msra.mxu0 %v489
    %508 = vmatprep.subr.bf16.mxu0 0
    %509 = vmatpush1.bf16.msra.mxu0 %v490
    %510 = vmatprep.subr.bf16.mxu0 0
    %511 = vmatpush1.bf16.msra.mxu0 %v491
    %512 = vmatprep.subr.bf16.mxu0 0
    %513 = vmatpush1.bf16.msra.mxu0 %v492
    %514 = vmatprep.subr.bf16.mxu0 0
    %515 = vmatpush1.bf16.msra.mxu0 %v493
    %516 = vmatprep.subr.bf16.mxu0 0
    %517 = vmatpush1.bf16.msra.mxu0 %v494
    %518 = vmatprep.subr.bf16.mxu0 0
    %519 = vmatpush1.bf16.msra.mxu0 %v495
    %520 = vmatprep.subr.bf16.mxu0 0
    %521 = vmatpush1.bf16.msra.mxu0 0
    %522 = vmatprep.subr.bf16.mxu0 0
    %523 = vmatpush1.bf16.msra.mxu0 0
    %524 = vmatprep.subr.bf16.mxu0 0
    %525 = vmatpush1.bf16.msra.mxu0 0
    %526 = vmatprep.subr.bf16.mxu0 0
    %527 = vmatpush1.bf16.msra.mxu0 0
    %528 = vmatprep.subr.bf16.mxu0 0
    %529 = vmatpush1.bf16.msra.mxu0 0
    %530 = vmatprep.subr.bf16.mxu0 0
    %531 = vmatpush1.bf16.msra.mxu0 0
    %532 = vmatprep.subr.bf16.mxu0 0
    %533 = vmatpush1.bf16.msra.mxu0 0
    %534 = vmatprep.subr.bf16.mxu0 0
    %535 = vmatpush1.bf16.msra.mxu0 0
    %536 = vmatprep.mubr.bf16.mxu0 0
    %537 = vmatmul.mubr.bf16.gmra.mrb[0].mxu0 %v432
    %v538 = vpop.f32.mrb[0].mxu0
    %v539 = vadd.f32 %v454, %v538
    %v540 = vpop.f32.mrb[0].mxu0
    %v541 = vpop.f32.mrb[0].mxu0
    %v542 = vpop.f32.mrb[0].mxu0
    %543 = vdwg.mxu0
    %v544 = vpack.c.bf16 %v539, %v539
    %v545 = vtanh.bf16.pop %v544
    %v546 = vld [vmem:[%s9] sm:$0xf]
    %v547 = vld [vmem:[%s9 + $0x4] sm:$0xf]
    %v548 = vld [vmem:[%s9 + $0x8] sm:$0xf]
    %v549 = vld [vmem:[%s9 + $0xc] sm:$0xf]
    %v550 = vld [vmem:[%s9 + $0x10] sm:$0xf]
    %v551 = vld [vmem:[%s9 + $0x14] sm:$0xf]
    %v552 = vld [vmem:[%s9 + $0x18] sm:$0xf]
    %v553 = vld [vmem:[%s9 + $0x1c] sm:$0xf]
    %v554 = vld [vmem:[%s9 + $0x20] sm:$0xf]
    %v555 = vld [vmem:[%s9 + $0x24] sm:$0xf]
    %v556 = vld [vmem:[%s9 + $0x28] sm:$0xf]
    %v557 = vld [vmem:[%s9 + $0x2c] sm:$0xf]
    %v558 = vld [vmem:[%s9 + $0x30] sm:$0xf]
    %v559 = vld [vmem:[%s9 + $0x34] sm:$0xf]
    %v560 = vld [vmem:[%s9 + $0x38] sm:$0xf]
    %v561 = vld [vmem:[%s9 + $0x3c] sm:$0xf]
    %v562 = vld [vmem:[%s10] sm:$0x1]
    %v564 = vlaneseq
    %v565 = vshrl.u32 %v564, 7
    %v566 = vsub.s32 0, %v565
    %v567 = vrot.slane %v562, %v566
    %v585 = vunpack.c.l.b16 %v546
    %v586 = vunpack.c.l.b16 %v547
    %v587 = vunpack.c.l.b16 %v548
    %v588 = vunpack.c.l.b16 %v549
    %v589 = vunpack.c.l.b16 %v550
    %v590 = vunpack.c.l.b16 %v551
    %v591 = vunpack.c.l.b16 %v552
    %v592 = vunpack.c.l.b16 %v553
    %v593 = vunpack.c.l.b16 %v554
    %v594 = vunpack.c.l.b16 %v555
    %v595 = vunpack.c.l.b16 %v556
    %v596 = vunpack.c.l.b16 %v557
    %v597 = vunpack.c.l.b16 %v558
    %v598 = vunpack.c.l.b16 %v559
    %v599 = vunpack.c.l.b16 %v560
    %v600 = vunpack.c.l.b16 %v561
    %v601 = vpack.c.b16 %v586, %v585
    %v602 = vpack.c.b16 %v588, %v587
    %v603 = vpack.c.b16 %v590, %v589
    %v604 = vpack.c.b16 %v592, %v591
    %v605 = vpack.c.b16 %v594, %v593
    %v606 = vpack.c.b16 %v596, %v595
    %v607 = vpack.c.b16 %v598, %v597
    %v608 = vpack.c.b16 %v600, %v599
    %617 = vmatprep.subr.bf16.mxu0 0
    %618 = vmatpush1.bf16.msra.mxu0 %v601
    %619 = vmatprep.subr.bf16.mxu0 0
    %620 = vmatpush1.bf16.msra.mxu0 %v602
    %621 = vmatprep.subr.bf16.mxu0 0
    %622 = vmatpush1.bf16.msra.mxu0 %v603
    %623 = vmatprep.subr.bf16.mxu0 0
    %624 = vmatpush1.bf16.msra.mxu0 %v604
    %625 = vmatprep.subr.bf16.mxu0 0
    %626 = vmatpush1.bf16.msra.mxu0 %v605
    %627 = vmatprep.subr.bf16.mxu0 0
    %628 = vmatpush1.bf16.msra.mxu0 %v606
    %629 = vmatprep.subr.bf16.mxu0 0
    %630 = vmatpush1.bf16.msra.mxu0 %v607
    %631 = vmatprep.subr.bf16.mxu0 0
    %632 = vmatpush1.bf16.msra.mxu0 %v608
    %633 = vmatprep.subr.bf16.mxu0 0
    %634 = vmatpush1.bf16.msra.mxu0 0
    %635 = vmatprep.subr.bf16.mxu0 0
    %636 = vmatpush1.bf16.msra.mxu0 0
    %637 = vmatprep.subr.bf16.mxu0 0
    %638 = vmatpush1.bf16.msra.mxu0 0
    %639 = vmatprep.subr.bf16.mxu0 0
    %640 = vmatpush1.bf16.msra.mxu0 0
    %641 = vmatprep.subr.bf16.mxu0 0
    %642 = vmatpush1.bf16.msra.mxu0 0
    %643 = vmatprep.subr.bf16.mxu0 0
    %644 = vmatpush1.bf16.msra.mxu0 0
    %645 = vmatprep.subr.bf16.mxu0 0
    %646 = vmatpush1.bf16.msra.mxu0 0
    %647 = vmatprep.subr.bf16.mxu0 0
    %648 = vmatpush1.bf16.msra.mxu0 0
    %649 = vmatprep.mubr.bf16.mxu0 0
    %650 = vmatmul.mubr.bf16.gmra.mrb[0].mxu0 %v545
    %v651 = vpop.f32.mrb[0].mxu0
    %v652 = vadd.f32 %v567, %v651
    %v653 = vpop.f32.mrb[0].mxu0
    %v654 = vpop.f32.mrb[0].mxu0
    %v655 = vpop.f32.mrb[0].mxu0
    %656 = vdwg.mxu0
    %v657 = vpack.c.bf16 %v652, %v652
    %v658 = vtanh.bf16.pop %v657
    %v659 = vld [vmem:[%s11] sm:$0xf]
    %v660 = vld [vmem:[%s11 + $0x4] sm:$0xf]
    %v661 = vld [vmem:[%s11 + $0x8] sm:$0xf]
    %v662 = vld [vmem:[%s11 + $0xc] sm:$0xf]
    %v663 = vld [vmem:[%s11 + $0x10] sm:$0xf]
    %v664 = vld [vmem:[%s11 + $0x14] sm:$0xf]
    %v665 = vld [vmem:[%s11 + $0x18] sm:$0xf]
    %v666 = vld [vmem:[%s11 + $0x1c] sm:$0xf]
    %v667 = vld [vmem:[%s11 + $0x20] sm:$0xf]
    %v668 = vld [vmem:[%s11 + $0x24] sm:$0xf]
    %v669 = vld [vmem:[%s11 + $0x28] sm:$0xf]
    %v670 = vld [vmem:[%s11 + $0x2c] sm:$0xf]
    %v671 = vld [vmem:[%s11 + $0x30] sm:$0xf]
    %v672 = vld [vmem:[%s11 + $0x34] sm:$0xf]
    %v673 = vld [vmem:[%s11 + $0x38] sm:$0xf]
    %v674 = vld [vmem:[%s11 + $0x3c] sm:$0xf]
    %v675 = vld [vmem:[%s12] sm:$0x1]
    %v677 = vlaneseq
    %v678 = vshrl.u32 %v677, 7
    %v679 = vsub.s32 0, %v678
    %v680 = vrot.slane %v675, %v679
    %v698 = vunpack.c.l.b16 %v659
    %v699 = vunpack.c.l.b16 %v660
    %v700 = vunpack.c.l.b16 %v661
    %v701 = vunpack.c.l.b16 %v662
    %v702 = vunpack.c.l.b16 %v663
    %v703 = vunpack.c.l.b16 %v664
    %v704 = vunpack.c.l.b16 %v665
    %v705 = vunpack.c.l.b16 %v666
    %v706 = vunpack.c.l.b16 %v667
    %v707 = vunpack.c.l.b16 %v668
    %v708 = vunpack.c.l.b16 %v669
    %v709 = vunpack.c.l.b16 %v670
    %v710 = vunpack.c.l.b16 %v671
    %v711 = vunpack.c.l.b16 %v672
    %v712 = vunpack.c.l.b16 %v673
    %v713 = vunpack.c.l.b16 %v674
    %v714 = vpack.c.b16 %v699, %v698
    %v715 = vpack.c.b16 %v701, %v700
    %v716 = vpack.c.b16 %v703, %v702
    %v717 = vpack.c.b16 %v705, %v704
    %v718 = vpack.c.b16 %v707, %v706
    %v719 = vpack.c.b16 %v709, %v708
    %v720 = vpack.c.b16 %v711, %v710
    %v721 = vpack.c.b16 %v713, %v712
    %730 = vmatprep.subr.bf16.mxu0 0
    %731 = vmatpush1.bf16.msra.mxu0 %v714
    %732 = vmatprep.subr.bf16.mxu0 0
    %733 = vmatpush1.bf16.msra.mxu0 %v715
    %734 = vmatprep.subr.bf16.mxu0 0
    %735 = vmatpush1.bf16.msra.mxu0 %v716
    %736 = vmatprep.subr.bf16.mxu0 0
    %737 = vmatpush1.bf16.msra.mxu0 %v717
    %738 = vmatprep.subr.bf16.mxu0 0
    %739 = vmatpush1.bf16.msra.mxu0 %v718
    %740 = vmatprep.subr.bf16.mxu0 0
    %741 = vmatpush1.bf16.msra.mxu0 %v719
    %742 = vmatprep.subr.bf16.mxu0 0
    %743 = vmatpush1.bf16.msra.mxu0 %v720
    %744 = vmatprep.subr.bf16.mxu0 0
    %745 = vmatpush1.bf16.msra.mxu0 %v721
    %746 = vmatprep.subr.bf16.mxu0 0
    %747 = vmatpush1.bf16.msra.mxu0 0
    %748 = vmatprep.subr.bf16.mxu0 0
    %749 = vmatpush1.bf16.msra.mxu0 0
    %750 = vmatprep.subr.bf16.mxu0 0
    %751 = vmatpush1.bf16.msra.mxu0 0
    %752 = vmatprep.subr.bf16.mxu0 0
    %753 = vmatpush1.bf16.msra.mxu0 0
    %754 = vmatprep.subr.bf16.mxu0 0
    %755 = vmatpush1.bf16.msra.mxu0 0
    %756 = vmatprep.subr.bf16.mxu0 0
    %757 = vmatpush1.bf16.msra.mxu0 0
    %758 = vmatprep.subr.bf16.mxu0 0
    %759 = vmatpush1.bf16.msra.mxu0 0
    %760 = vmatprep.subr.bf16.mxu0 0
    %761 = vmatpush1.bf16.msra.mxu0 0
    %762 = vmatprep.mubr.bf16.mxu0 0
    %763 = vmatmul.mubr.bf16.gmra.mrb[0].mxu0 %v658
    %v764 = vpop.f32.mrb[0].mxu0
    %v765 = vadd.f32 %v680, %v764
    %v766 = vpop.f32.mrb[0].mxu0
    %v767 = vpop.f32.mrb[0].mxu0
    %v768 = vpop.f32.mrb[0].mxu0
    %769 = vdwg.mxu0
    %770 = vst.msk [vmem:[#allocation13] sm:$0xff] %vm162, %v765
    // Predicated region
    $region78: #{tpu_custom_call.1} parent=1 // pred_check
      _
    $region79: #{tpu_custom_call.1} parent=1 // pred_check_branch
      %772 = sbr.rel (0) target = $region81
    $region80: #{tpu_custom_call.1} parent=1 // pred_region
      %s774 = ssub.s32 128, 128
      %775 = vsyncadd [#allocation4], %s774
      %s777 = sshll.u32 [#allocation13], 4
      %s778 = int_to_ptr.vmem [resolvable:$true] %s777
      %780 = dma.vmem_to_hbm [thread:$0]  %s778, 128, %s13, [#allocation4]
    $region81: #{tpu_custom_call.1} parent=1 // pred_fallthru
      _
    // Predicated region
    $region82: #{tpu_custom_call.1} parent=1 // pred_check
      _
    $region83: #{tpu_custom_call.1} parent=1 // pred_check_branch
      %782 = sbr.rel (0) target = $region85
    $region84: #{tpu_custom_call.1} parent=1 // pred_region
      %783 = dma.done [#allocation4], 128
    $region85: #{tpu_custom_call.1} parent=1 // pred_fallthru
      _
    %784 = vsyncpa [#allocation3], 1
    %785 = vsyncpa [#allocation6], 1
    %786 = vsyncpa [#allocation9], 1
    %787 = vsyncpa [#allocation12], 1
    %788 = vsyncpa [#allocation4], 1

</llo_original>
